<compile_context>
chip_gen: v7x
topology: tpu7x:2x2x1
jax: 0.10.0
libtpu: 0.0.40
codegen_flags: <defaults>
</compile_context>

<pallas_src>
import jax
import jax.numpy as jnp
from jax.experimental import pallas as pl
from jax.experimental.pallas import tpu as pltpu

EPS = 1e-5
D_IN = 48 * 4 * 4      # 768
HID = 100
PAD = 128              # lane-padded hidden / class width
NEG = -1e30            # "masked" bias for padded class lanes


def _classifier_kernel(x_ref, w1_ref, w2_ref, w3_ref, b_ref, o_ref):
    x = x_ref[...]

    # linear1 (+ folded bn1) + ReLU
    h = jnp.dot(x, w1_ref[...], preferred_element_type=jnp.float32) + b_ref[0:1, :]
    h = jnp.maximum(h, 0.0)

    # Dropout2d: identity in inference mode
    # TODO(synk): training-mode stochastic Dropout2d not reproduced (would need pltpu PRNG state).

    # linear2 (+ folded bn2) + ReLU
    h = jnp.dot(h.astype(w2_ref.dtype), w2_ref[...],
                preferred_element_type=jnp.float32) + b_ref[1:2, :]
    h = jnp.maximum(h, 0.0)

    # linear3; padded class lanes have bias = -1e30 so they vanish in log_softmax
    logits = jnp.dot(h.astype(w3_ref.dtype), w3_ref[...],
                     preferred_element_type=jnp.float32) + b_ref[2:3, :]

    # log_softmax over dim=1
    m = jnp.max(logits, axis=-1, keepdims=True)
    z = logits - m
    lse = jnp.log(jnp.sum(jnp.exp(z), axis=-1, keepdims=True))
    o_ref[...] = (z - lse).astype(o_ref.dtype)


def _round_up(x, m):
    return (x + m - 1) // m * m


def _fold_and_pad(params, compute_dtype):
    """Fold inference BN into linears, pad feature dims to 128 lanes."""
    s1 = params["g1"] * jax.lax.rsqrt(params["v1"] + EPS)
    w1 = params["w1"] * s1                                   # (768, 100)
    b1 = (params["b1"] - params["m1"]) * s1 + params["be1"]  # (1, 100)
    s2 = params["g2"] * jax.lax.rsqrt(params["v2"] + EPS)
    w2 = params["w2"] * s2                                   # (100, 100)
    b2 = (params["b2"] - params["m2"]) * s2 + params["be2"]  # (1, 100)
    w3, b3 = params["w3"], params["b3"]
    num_classes = w3.shape[1]

    def pad_to(a, rows, cols):
        return jnp.pad(a, ((0, rows - a.shape[0]), (0, cols - a.shape[1])))

    w1p = pad_to(w1, w1.shape[0], PAD).astype(compute_dtype)   # (768, 128)
    w2p = pad_to(w2, PAD, PAD).astype(compute_dtype)           # (128, 128)
    w3p = pad_to(w3, PAD, PAD).astype(compute_dtype)           # (128, 128)

    b1p = pad_to(b1.astype(jnp.float32), 1, PAD)
    b2p = pad_to(b2.astype(jnp.float32), 1, PAD)
    b3p = jnp.concatenate(
        [b3.astype(jnp.float32),
         jnp.full((1, PAD - num_classes), NEG, jnp.float32)], axis=1)
    b_all = jnp.concatenate([b1p, b2p, b3p], axis=0)           # (3, 128) f32
    return w1p, w2p, w3p, b_all, num_classes


def class_classifier_forward(x, params, *, tile_b=1024, compute_dtype=jnp.float32):
    """x: (B, 768) float32 -> (B, num_classes) log-probabilities."""
    B, d_in = x.shape
    w1p, w2p, w3p, b_all, num_classes = _fold_and_pad(params, compute_dtype)

    # Batch tiling: full tile for small B, otherwise tile_b rows per grid step.
    tile_b = min(tile_b, _round_up(B, 8))
    b_pad = _round_up(B, tile_b)
    xp = x.astype(compute_dtype)
    if b_pad != B:
        xp = jnp.pad(xp, ((0, b_pad - B), (0, 0)))

    grid = (b_pad // tile_b,)

    def const_spec(a):
        nd = a.ndim
        return pl.BlockSpec(a.shape, lambda i, _nd=nd: (0,) * _nd)

    out = pl.pallas_call(
        _classifier_kernel,
        out_shape=jax.ShapeDtypeStruct((b_pad, PAD), jnp.float32),
        grid=grid,
        in_specs=[
            pl.BlockSpec((tile_b, d_in), lambda i: (i, 0)),   # x: streamed per tile
            const_spec(w1p),                                  # weights: VMEM-resident
            const_spec(w2p),
            const_spec(w3p),
            const_spec(b_all),
        ],
        out_specs=pl.BlockSpec((tile_b, PAD), lambda i: (i, 0)),  # lane-dense store
        compiler_params=pltpu.CompilerParams(
            dimension_semantics=("parallel",)),
    )(xp, w1p, w2p, w3p, b_all)

    return out[:B, :num_classes]


def init_params(key, num_classes=10):
    """Parameter init mirroring the module's shapes (non-trivial BN stats)."""
    ks = jax.random.split(key, 14)

    def linear(kw, kb, fan_in, fan_out):
        bound = 1.0 / jnp.sqrt(fan_in)
        w = jax.random.uniform(kw, (fan_in, fan_out), jnp.float32, -bound, bound)
        b = jax.random.uniform(kb, (1, fan_out), jnp.float32, -bound, bound)
        return w, b

    w1, b1 = linear(ks[0], ks[1], D_IN, HID)
    w2, b2 = linear(ks[2], ks[3], HID, HID)
    w3, b3 = linear(ks[4], ks[5], HID, num_classes)

    def bn(kg, kb, km, kv, n):
        g = 1.0 + 0.1 * jax.random.normal(kg, (1, n), jnp.float32)
        be = 0.1 * jax.random.normal(kb, (1, n), jnp.float32)
        m = 0.1 * jax.random.normal(km, (1, n), jnp.float32)
        v = jax.random.uniform(kv, (1, n), jnp.float32, 0.5, 1.5)
        return g, be, m, v

    g1, be1, m1, v1 = bn(ks[6], ks[7], ks[8], ks[9], HID)
    g2, be2, m2, v2 = bn(ks[10], ks[11], ks[12], ks[13], HID)

    return dict(
        w1=w1, b1=b1, g1=g1, be1=be1, m1=m1, v1=v1,
        w2=w2, b2=b2, g2=g2, be2=be2, m2=m2, v2=v2,
        w3=w3, b3=b3,
    )


def reference_forward(x, p):
    h = x @ p["w1"] + p["b1"]
    h = (h - p["m1"]) * (p["g1"] / jnp.sqrt(p["v1"] + EPS)) + p["be1"]
    h = jnp.maximum(h, 0.0)
    h = h @ p["w2"] + p["b2"]
    h = (h - p["m2"]) * (p["g2"] / jnp.sqrt(p["v2"] + EPS)) + p["be2"]
    h = jnp.maximum(h, 0.0)
    logits = h @ p["w3"] + p["b3"]
    return jax.nn.log_softmax(logits, axis=1)


if __name__ == "__main__":
    key = jax.random.PRNGKey(0)
    k_x, k_p = jax.random.split(key)

    B, NUM_CLASSES = 8, 10
    x = jax.random.normal(k_x, (B, D_IN), jnp.float32)
    params = init_params(k_p, NUM_CLASSES)

    ref = reference_forward(x, params)

    # f32 path: exact-semantics check.
    out = jax.block_until_ready(class_classifier_forward(x, params))
    assert out.shape == (B, NUM_CLASSES)
    assert jnp.allclose(out, ref, atol=1e-4, rtol=1e-4), "f32 mismatch vs reference"

    # bf16 fast path (halves HBM bytes on x/weights); loose tolerance.
    out_bf16 = jax.block_until_ready(
        class_classifier_forward(x, params, compute_dtype=jnp.bfloat16))
    assert out_bf16.shape == (B, NUM_CLASSES)
    assert jnp.allclose(out_bf16, ref, atol=1e-1, rtol=1e-1), "bf16 mismatch vs reference"

    print("KERNEL_OK")
</pallas_src>

<mosaic_0001>
module attributes {stable_mosaic.version = 11 : i64} {
  func.func @_classifier_kernel(%arg0: i32, %arg1: memref<8x768xf32, #tpu.memory_space<vmem>>, %arg2: memref<768x128xf32, #tpu.memory_space<vmem>>, %arg3: memref<128x128xf32, #tpu.memory_space<vmem>>, %arg4: memref<128x128xf32, #tpu.memory_space<vmem>>, %arg5: memref<3x128xf32, #tpu.memory_space<vmem>>, %arg6: memref<8x128xf32, #tpu.memory_space<vmem>>) attributes {dimension_semantics = [#tpu.dimension_semantics<parallel>], iteration_bounds = array<i64: 1>, scalar_prefetch = 0 : i64, scratch_operands = 0 : i64, tpu.core_type = #tpu.core_type<tc>, window_params = [{transform_indices = @transform_0, window_bounds = array<i64: 8, 768>}, {pipeline_mode = #tpu.pipeline_mode<synchronous>, transform_indices = @transform_1, window_bounds = array<i64: 768, 128>}, {pipeline_mode = #tpu.pipeline_mode<synchronous>, transform_indices = @transform_2, window_bounds = array<i64: 128, 128>}, {pipeline_mode = #tpu.pipeline_mode<synchronous>, transform_indices = @transform_3, window_bounds = array<i64: 128, 128>}, {pipeline_mode = #tpu.pipeline_mode<synchronous>, transform_indices = @transform_4, window_bounds = array<i64: 3, 128>}, {transform_indices = @transform_5, window_bounds = array<i64: 8, 128>}]} {
    %c0 = arith.constant 0 : index
    %c0_0 = arith.constant 0 : index
    %0 = vector.load %arg1[%c0, %c0_0] : memref<8x768xf32, #tpu.memory_space<vmem>>, vector<8x768xf32>
    %c0_1 = arith.constant 0 : index
    %c0_2 = arith.constant 0 : index
    %1 = vector.load %arg2[%c0_1, %c0_2] : memref<768x128xf32, #tpu.memory_space<vmem>>, vector<768x128xf32>
    %cst = arith.constant dense<0.000000e+00> : vector<8x128xf32>
    %2 = tpu.matmul %0, %1, %cst {dimension_numbers = #tpu.dot_dimension_numbers<[1], [0], [0], [1], [0, 0, 1, 1], [], []>} : vector<8x768xf32>, vector<768x128xf32>, vector<8x128xf32> -> vector<8x128xf32>
    %c0_3 = arith.constant 0 : index
    %c0_4 = arith.constant 0 : index
    %3 = vector.load %arg5[%c0_3, %c0_4] : memref<3x128xf32, #tpu.memory_space<vmem>>, vector<1x128xf32>
    %4 = vector.broadcast %3 : vector<1x128xf32> to vector<8x128xf32>
    %5 = arith.addf %2, %4 : vector<8x128xf32>
    %cst_5 = arith.constant 0.000000e+00 : f32
    %6 = vector.broadcast %cst_5 : f32 to vector<8x128xf32>
    %7 = arith.maximumf %5, %6 : vector<8x128xf32>
    %c0_6 = arith.constant 0 : index
    %c0_7 = arith.constant 0 : index
    %8 = vector.load %arg3[%c0_6, %c0_7] : memref<128x128xf32, #tpu.memory_space<vmem>>, vector<128x128xf32>
    %cst_8 = arith.constant dense<0.000000e+00> : vector<8x128xf32>
    %9 = tpu.matmul %7, %8, %cst_8 {dimension_numbers = #tpu.dot_dimension_numbers<[1], [0], [0], [1], [0, 0, 1, 1], [], []>} : vector<8x128xf32>, vector<128x128xf32>, vector<8x128xf32> -> vector<8x128xf32>
    %c1 = arith.constant 1 : index
    %c0_9 = arith.constant 0 : index
    %10 = vector.load %arg5[%c1, %c0_9] : memref<3x128xf32, #tpu.memory_space<vmem>>, vector<1x128xf32>
    %11 = vector.broadcast %10 : vector<1x128xf32> to vector<8x128xf32>
    %12 = arith.addf %9, %11 : vector<8x128xf32>
    %cst_10 = arith.constant 0.000000e+00 : f32
    %13 = vector.broadcast %cst_10 : f32 to vector<8x128xf32>
    %14 = arith.maximumf %12, %13 : vector<8x128xf32>
    %c0_11 = arith.constant 0 : index
    %c0_12 = arith.constant 0 : index
    %15 = vector.load %arg4[%c0_11, %c0_12] : memref<128x128xf32, #tpu.memory_space<vmem>>, vector<128x128xf32>
    %cst_13 = arith.constant dense<0.000000e+00> : vector<8x128xf32>
    %16 = tpu.matmul %14, %15, %cst_13 {dimension_numbers = #tpu.dot_dimension_numbers<[1], [0], [0], [1], [0, 0, 1, 1], [], []>} : vector<8x128xf32>, vector<128x128xf32>, vector<8x128xf32> -> vector<8x128xf32>
    %c2 = arith.constant 2 : index
    %c0_14 = arith.constant 0 : index
    %17 = vector.load %arg5[%c2, %c0_14] : memref<3x128xf32, #tpu.memory_space<vmem>>, vector<1x128xf32>
    %18 = vector.broadcast %17 : vector<1x128xf32> to vector<8x128xf32>
    %19 = arith.addf %16, %18 : vector<8x128xf32>
    %cst_15 = arith.constant dense<0xFF800000> : vector<8xf32>
    %20 = vector.multi_reduction <maximumf>, %19, %cst_15 [1] : vector<8x128xf32> to vector<8xf32>
    %21 = vector.shape_cast %20 : vector<8xf32> to vector<8x1xf32>
    %22 = vector.broadcast %21 : vector<8x1xf32> to vector<8x128xf32>
    %23 = arith.subf %19, %22 : vector<8x128xf32>
    %24 = math.exp %23 : vector<8x128xf32>
    %cst_16 = arith.constant dense<0.000000e+00> : vector<8xf32>
    %25 = vector.multi_reduction <add>, %24, %cst_16 [1] : vector<8x128xf32> to vector<8xf32>
    %26 = vector.shape_cast %25 : vector<8xf32> to vector<8x1xf32>
    %27 = math.log %26 : vector<8x1xf32>
    %28 = vector.broadcast %27 : vector<8x1xf32> to vector<8x128xf32>
    %29 = arith.subf %23, %28 : vector<8x128xf32>
    %c0_17 = arith.constant 0 : index
    %c0_18 = arith.constant 0 : index
    %30 = vector.load %arg6[%c0_17, %c0_18] : memref<8x128xf32, #tpu.memory_space<vmem>>, vector<8x128xf32>
    tpu.vector_store %arg6[%c0_17, %c0_18], %29 {strides = array<i32>} : memref<8x128xf32, #tpu.memory_space<vmem>>, vector<8x128xf32>,
    return
  }
  func.func @transform_0(%arg0: i32) -> (i32, i32) {
    %c0_i32 = arith.constant 0 : i32
    %c0_i32_0 = arith.constant 0 : i32
    return %arg0, %c0_i32 : i32, i32
  }
  func.func @transform_1(%arg0: i32) -> (i32, i32) {
    %c0_i32 = arith.constant 0 : i32
    %c0_i32_0 = arith.constant 0 : i32
    %c0_i32_1 = arith.constant 0 : i32
    return %c0_i32, %c0_i32_0 : i32, i32
  }
  func.func @transform_2(%arg0: i32) -> (i32, i32) {
    %c0_i32 = arith.constant 0 : i32
    %c0_i32_0 = arith.constant 0 : i32
    %c0_i32_1 = arith.constant 0 : i32
    return %c0_i32, %c0_i32_0 : i32, i32
  }
  func.func @transform_3(%arg0: i32) -> (i32, i32) {
    %c0_i32 = arith.constant 0 : i32
    %c0_i32_0 = arith.constant 0 : i32
    %c0_i32_1 = arith.constant 0 : i32
    return %c0_i32, %c0_i32_0 : i32, i32
  }
  func.func @transform_4(%arg0: i32) -> (i32, i32) {
    %c0_i32 = arith.constant 0 : i32
    %c0_i32_0 = arith.constant 0 : i32
    %c0_i32_1 = arith.constant 0 : i32
    return %c0_i32, %c0_i32_0 : i32, i32
  }
  func.func @transform_5(%arg0: i32) -> (i32, i32) {
    %c0_i32 = arith.constant 0 : i32
    %c0_i32_0 = arith.constant 0 : i32
    return %arg0, %c0_i32 : i32, i32
  }
}

</mosaic_0001>

<llo_original>
// kernel: tpu_custom_call.1
$region0: #{tpu_custom_call.1}
  #allocation0 [shape = 'u32[]', space=smem, size = 0x4, offset = 0x4, fixed_abs, tag = 'smem constant byte address 0x4 - core index']
  #allocation1 [shape = 'u32[144,128]{1,0:T(1,128)}', space=vmem, size = 0x12000, scoped, tag = 'internal scratch']
  %s0 = inlined_call_operand.hbm [shape: f32[8,768], index: 0, kind: input, shape index: {}]
  %s1 = inlined_call_operand.hbm [shape: f32[768,128], index: 1, kind: input, shape index: {}]
  %s2 = inlined_call_operand.hbm [shape: f32[128,128], index: 2, kind: input, shape index: {}]
  %s3 = inlined_call_operand.hbm [shape: f32[128,128], index: 3, kind: input, shape index: {}]
  %s4 = inlined_call_operand.vmem [shape: f32[3,128], index: 4, kind: input, shape index: {}]
  %s5 = inlined_call_operand.hbm [shape: f32[8,128], index: 5, kind: output, shape index: {}]
  %s6 = sld [smem:[#allocation0]]
  $region46: #{tpu_custom_call.1} parent=0
    _
  %s8 = ssub.s32 1, %s6
  %s9 = scalar_select 0, %s8, %s6
  $region1: #{tpu_custom_call.1} parent=0
    #allocation2 [shape = 'u8[24576]{0}', space=vmem, size = 0x6000, scoped, tag = 'input window, operand 0, single buffered']
    #allocation3 [shape = 's32[1]{0}', space=sflag, size = 0x4, scoped, tag = 'scoped memory for tpu_custom_call.1']
    #allocation4 [shape = 's32[1]{0}', space=sflag, size = 0x4, scoped, tag = 'scoped memory for tpu_custom_call.1']
    #allocation5 [shape = 'u8[393216]{0}', space=vmem, size = 0x60000, scoped, tag = 'input window, operand 1, single buffered']
    #allocation6 [shape = 's32[1]{0}', space=sflag, size = 0x4, scoped, tag = 'scoped memory for tpu_custom_call.1']
    #allocation7 [shape = 'u8[65536]{0}', space=vmem, size = 0x10000, scoped, tag = 'input window, operand 2, single buffered']
    #allocation8 [shape = 'u8[65536]{0}', space=vmem, size = 0x10000, scoped, tag = 'input window, operand 3, single buffered']
    #allocation9 [shape = 's32[1]{0}', space=sflag, size = 0x4, scoped, tag = 'scoped memory for tpu_custom_call.1']
    #allocation10 [shape = 'u8[4096]{0}', space=vmem, size = 0x1000, scoped, tag = 'output window, operand 0, single buffered']
    %10 = vsyncpa [#allocation3], 0
    %11 = vsyncpa [#allocation6], 0
    %12 = vsyncpa [#allocation9], 0
    %13 = vsyncpa [#allocation4], 0
    // Predicated region
    $region2: #{tpu_custom_call.1} parent=1 // pred_check
      _
    $region3: #{tpu_custom_call.1} parent=1 // pred_check_branch
      %15 = sbr.rel (0) target = $region5
    $region4: #{tpu_custom_call.1} parent=1 // pred_region
      %s17 = ssub.s32 768, 768
      %18 = vsyncadd [#allocation3], %s17
      %s20 = sshll.u32 [#allocation2], 4
      %s21 = int_to_ptr.vmem [resolvable:$true] %s20
      %23 = dma.hbm_to_vmem [thread:$0]  %s0, 768, %s21, [#allocation3]
    $region5: #{tpu_custom_call.1} parent=1 // pred_fallthru
      _
    // Predicated region
    $region6: #{tpu_custom_call.1} parent=1 // pred_check
      _
    $region7: #{tpu_custom_call.1} parent=1 // pred_check_branch
      %25 = sbr.rel (0) target = $region9
    $region8: #{tpu_custom_call.1} parent=1 // pred_region
      %s27 = ssub.s32 12288, 12288
      %28 = vsyncadd [#allocation6], %s27
      %s29 = sshll.u32 [#allocation5], 4
      %s30 = int_to_ptr.vmem [resolvable:$true] %s29
      %35 = dma.hbm_to_vmem [thread:$0]  %s1, 12288, %s30, [#allocation6], 128, 128, 8
    $region9: #{tpu_custom_call.1} parent=1 // pred_fallthru
      _
    // Predicated region
    $region10: #{tpu_custom_call.1} parent=1 // pred_check
      _
    $region11: #{tpu_custom_call.1} parent=1 // pred_check_branch
      %37 = sbr.rel (0) target = $region13
    $region12: #{tpu_custom_call.1} parent=1 // pred_region
      %s39 = ssub.s32 2048, 2048
      %40 = vsyncadd [#allocation6], %s39
      %s41 = sshll.u32 [#allocation7], 4
      %s42 = int_to_ptr.vmem [resolvable:$true] %s41
      %47 = dma.hbm_to_vmem [thread:$0]  %s2, 2048, %s42, [#allocation6], 128, 128, 8
    $region13: #{tpu_custom_call.1} parent=1 // pred_fallthru
      _
    // Predicated region
    $region14: #{tpu_custom_call.1} parent=1 // pred_check
      _
    $region15: #{tpu_custom_call.1} parent=1 // pred_check_branch
      %49 = sbr.rel (0) target = $region17
    $region16: #{tpu_custom_call.1} parent=1 // pred_region
      %s51 = ssub.s32 2048, 2048
      %52 = vsyncadd [#allocation9], %s51
      %s53 = sshll.u32 [#allocation8], 4
      %s54 = int_to_ptr.vmem [resolvable:$true] %s53
      %59 = dma.hbm_to_vmem [thread:$0]  %s3, 2048, %s54, [#allocation9], 128, 128, 8
    $region17: #{tpu_custom_call.1} parent=1 // pred_fallthru
      _
    // Predicated region
    $region18: #{tpu_custom_call.1} parent=1 // pred_check
      _
    $region19: #{tpu_custom_call.1} parent=1 // pred_check_branch
      %61 = sbr.rel (0) target = $region21
    $region20: #{tpu_custom_call.1} parent=1 // pred_region
      _
    $region21: #{tpu_custom_call.1} parent=1 // pred_fallthru
      _
    // Predicated region
    $region22: #{tpu_custom_call.1} parent=1 // pred_check
      _
    $region23: #{tpu_custom_call.1} parent=1 // pred_check_branch
      %63 = sbr.rel (0) target = $region25
    $region24: #{tpu_custom_call.1} parent=1 // pred_region
      %64 = dma.done [#allocation3], 768
    $region25: #{tpu_custom_call.1} parent=1 // pred_fallthru
      _
    // Predicated region
    $region26: #{tpu_custom_call.1} parent=1 // pred_check
      _
    $region27: #{tpu_custom_call.1} parent=1 // pred_check_branch
      %66 = sbr.rel (0) target = $region29
    $region28: #{tpu_custom_call.1} parent=1 // pred_region
      %67 = dma.done [#allocation6], 12288
    $region29: #{tpu_custom_call.1} parent=1 // pred_fallthru
      _
    // Predicated region
    $region30: #{tpu_custom_call.1} parent=1 // pred_check
      _
    $region31: #{tpu_custom_call.1} parent=1 // pred_check_branch
      %69 = sbr.rel (0) target = $region33
    $region32: #{tpu_custom_call.1} parent=1 // pred_region
      %70 = dma.done [#allocation6], 2048
    $region33: #{tpu_custom_call.1} parent=1 // pred_fallthru
      _
    // Predicated region
    $region34: #{tpu_custom_call.1} parent=1 // pred_check
      _
    $region35: #{tpu_custom_call.1} parent=1 // pred_check_branch
      %72 = sbr.rel (0) target = $region37
    $region36: #{tpu_custom_call.1} parent=1 // pred_region
      %73 = dma.done [#allocation9], 2048
    $region37: #{tpu_custom_call.1} parent=1 // pred_fallthru
      _
    %v74 = vld [vmem:[#allocation2] sm:$0xff]
    %v75 = vld [vmem:[#allocation2 + $0x8] sm:$0xff]
    %v76 = vld [vmem:[#allocation2 + $0x10] sm:$0xff]
    %v77 = vld [vmem:[#allocation2 + $0x18] sm:$0xff]
    %v78 = vld [vmem:[#allocation2 + $0x20] sm:$0xff]
    %v79 = vld [vmem:[#allocation2 + $0x28] sm:$0xff]
    %v80 = vld [vmem:[#allocation5] sm:$0xff]
    %v81 = vld [vmem:[#allocation5 + $0x8] sm:$0xff]
    %v82 = vld [vmem:[#allocation5 + $0x10] sm:$0xff]
    %v83 = vld [vmem:[#allocation5 + $0x18] sm:$0xff]
    %v84 = vld [vmem:[#allocation5 + $0x20] sm:$0xff]
    %v85 = vld [vmem:[#allocation5 + $0x28] sm:$0xff]
    %v86 = vld [vmem:[#allocation5 + $0x30] sm:$0xff]
    %v87 = vld [vmem:[#allocation5 + $0x38] sm:$0xff]
    %v88 = vld [vmem:[#allocation5 + $0x40] sm:$0xff]
    %v89 = vld [vmem:[#allocation5 + $0x48] sm:$0xff]
    %v90 = vld [vmem:[#allocation5 + $0x50] sm:$0xff]
    %v91 = vld [vmem:[#allocation5 + $0x58] sm:$0xff]
    %v92 = vld [vmem:[#allocation5 + $0x60] sm:$0xff]
    %v93 = vld [vmem:[#allocation5 + $0x68] sm:$0xff]
    %v94 = vld [vmem:[#allocation5 + $0x70] sm:$0xff]
    %v95 = vld [vmem:[#allocation5 + $0x78] sm:$0xff]
    %v96 = vld [vmem:[#allocation5 + $0x80] sm:$0xff]
    %v97 = vld [vmem:[#allocation5 + $0x88] sm:$0xff]
    %v98 = vld [vmem:[#allocation5 + $0x90] sm:$0xff]
    %v99 = vld [vmem:[#allocation5 + $0x98] sm:$0xff]
    %v100 = vld [vmem:[#allocation5 + $0xa0] sm:$0xff]
    %v101 = vld [vmem:[#allocation5 + $0xa8] sm:$0xff]
    %v102 = vld [vmem:[#allocation5 + $0xb0] sm:$0xff]
    %v103 = vld [vmem:[#allocation5 + $0xb8] sm:$0xff]
    %v104 = vld [vmem:[#allocation5 + $0xc0] sm:$0xff]
    %v105 = vld [vmem:[#allocation5 + $0xc8] sm:$0xff]
    %v106 = vld [vmem:[#allocation5 + $0xd0] sm:$0xff]
    %v107 = vld [vmem:[#allocation5 + $0xd8] sm:$0xff]
    %v108 = vld [vmem:[#allocation5 + $0xe0] sm:$0xff]
    %v109 = vld [vmem:[#allocation5 + $0xe8] sm:$0xff]
    %v110 = vld [vmem:[#allocation5 + $0xf0] sm:$0xff]
    %v111 = vld [vmem:[#allocation5 + $0xf8] sm:$0xff]
    %v112 = vld [vmem:[#allocation5 + $0x100] sm:$0xff]
    %v113 = vld [vmem:[#allocation5 + $0x108] sm:$0xff]
    %v114 = vld [vmem:[#allocation5 + $0x110] sm:$0xff]
    %v115 = vld [vmem:[#allocation5 + $0x118] sm:$0xff]
    %v116 = vld [vmem:[#allocation5 + $0x120] sm:$0xff]
    %v117 = vld [vmem:[#allocation5 + $0x128] sm:$0xff]
    %v118 = vld [vmem:[#allocation5 + $0x130] sm:$0xff]
    %v119 = vld [vmem:[#allocation5 + $0x138] sm:$0xff]
    %v120 = vld [vmem:[#allocation5 + $0x140] sm:$0xff]
    %v121 = vld [vmem:[#allocation5 + $0x148] sm:$0xff]
    %v122 = vld [vmem:[#allocation5 + $0x150] sm:$0xff]
    %v123 = vld [vmem:[#allocation5 + $0x158] sm:$0xff]
    %v124 = vld [vmem:[#allocation5 + $0x160] sm:$0xff]
    %v125 = vld [vmem:[#allocation5 + $0x168] sm:$0xff]
    %v126 = vld [vmem:[#allocation5 + $0x170] sm:$0xff]
    %v127 = vld [vmem:[#allocation5 + $0x178] sm:$0xff]
    %v128 = vld [vmem:[#allocation5 + $0x180] sm:$0xff]
    %v129 = vld [vmem:[#allocation5 + $0x188] sm:$0xff]
    %v130 = vld [vmem:[#allocation5 + $0x190] sm:$0xff]
    %v131 = vld [vmem:[#allocation5 + $0x198] sm:$0xff]
    %v132 = vld [vmem:[#allocation5 + $0x1a0] sm:$0xff]
    %v133 = vld [vmem:[#allocation5 + $0x1a8] sm:$0xff]
    %v134 = vld [vmem:[#allocation5 + $0x1b0] sm:$0xff]
    %v135 = vld [vmem:[#allocation5 + $0x1b8] sm:$0xff]
    %v136 = vld [vmem:[#allocation5 + $0x1c0] sm:$0xff]
    %v137 = vld [vmem:[#allocation5 + $0x1c8] sm:$0xff]
    %v138 = vld [vmem:[#allocation5 + $0x1d0] sm:$0xff]
    %v139 = vld [vmem:[#allocation5 + $0x1d8] sm:$0xff]
    %v140 = vld [vmem:[#allocation5 + $0x1e0] sm:$0xff]
    %v141 = vld [vmem:[#allocation5 + $0x1e8] sm:$0xff]
    %v142 = vld [vmem:[#allocation5 + $0x1f0] sm:$0xff]
    %v143 = vld [vmem:[#allocation5 + $0x1f8] sm:$0xff]
    %v144 = vld [vmem:[#allocation5 + $0x200] sm:$0xff]
    %v145 = vld [vmem:[#allocation5 + $0x208] sm:$0xff]
    %v146 = vld [vmem:[#allocation5 + $0x210] sm:$0xff]
    %v147 = vld [vmem:[#allocation5 + $0x218] sm:$0xff]
    %v148 = vld [vmem:[#allocation5 + $0x220] sm:$0xff]
    %v149 = vld [vmem:[#allocation5 + $0x228] sm:$0xff]
    %v150 = vld [vmem:[#allocation5 + $0x230] sm:$0xff]
    %v151 = vld [vmem:[#allocation5 + $0x238] sm:$0xff]
    %v152 = vld [vmem:[#allocation5 + $0x240] sm:$0xff]
    %v153 = vld [vmem:[#allocation5 + $0x248] sm:$0xff]
    %v154 = vld [vmem:[#allocation5 + $0x250] sm:$0xff]
    %v155 = vld [vmem:[#allocation5 + $0x258] sm:$0xff]
    %v156 = vld [vmem:[#allocation5 + $0x260] sm:$0xff]
    %v157 = vld [vmem:[#allocation5 + $0x268] sm:$0xff]
    %v158 = vld [vmem:[#allocation5 + $0x270] sm:$0xff]
    %v159 = vld [vmem:[#allocation5 + $0x278] sm:$0xff]
    %v160 = vld [vmem:[#allocation5 + $0x280] sm:$0xff]
    %v161 = vld [vmem:[#allocation5 + $0x288] sm:$0xff]
    %v162 = vld [vmem:[#allocation5 + $0x290] sm:$0xff]
    %v163 = vld [vmem:[#allocation5 + $0x298] sm:$0xff]
    %v164 = vld [vmem:[#allocation5 + $0x2a0] sm:$0xff]
    %v165 = vld [vmem:[#allocation5 + $0x2a8] sm:$0xff]
    %v166 = vld [vmem:[#allocation5 + $0x2b0] sm:$0xff]
    %v167 = vld [vmem:[#allocation5 + $0x2b8] sm:$0xff]
    %v168 = vld [vmem:[#allocation5 + $0x2c0] sm:$0xff]
    %v169 = vld [vmem:[#allocation5 + $0x2c8] sm:$0xff]
    %v170 = vld [vmem:[#allocation5 + $0x2d0] sm:$0xff]
    %v171 = vld [vmem:[#allocation5 + $0x2d8] sm:$0xff]
    %v172 = vld [vmem:[#allocation5 + $0x2e0] sm:$0xff]
    %v173 = vld [vmem:[#allocation5 + $0x2e8] sm:$0xff]
    %v174 = vld [vmem:[#allocation5 + $0x2f0] sm:$0xff]
    %v175 = vld [vmem:[#allocation5 + $0x2f8] sm:$0xff]
    %v176 = vld [vmem:[%s4] sm:$0x1]
    %v177 = vlaneseq
    %v178 = vshrl.u32 %v177, 7
    %v179 = vsub.s32 0, %v178
    %v180 = vrot.slane %v176, %v179
    %181 = vmatprep.subr.mxu0 0.0
    %182 = vmatpush1.msra.mxu0 %v80
    %183 = vmatprep.subr.mxu0 0.0
    %184 = vmatpush1.msra.mxu0 %v81
    %185 = vmatprep.subr.mxu0 0.0
    %186 = vmatpush1.msra.mxu0 %v82
    %187 = vmatprep.subr.mxu0 0.0
    %188 = vmatpush1.msra.mxu0 %v83
    %189 = vmatprep.subr.mxu0 0.0
    %190 = vmatpush1.msra.mxu0 %v84
    %191 = vmatprep.subr.mxu0 0.0
    %192 = vmatpush1.msra.mxu0 %v85
    %193 = vmatprep.subr.mxu0 0.0
    %194 = vmatpush1.msra.mxu0 %v86
    %195 = vmatprep.subr.mxu0 0.0
    %196 = vmatpush1.msra.mxu0 %v87
    %197 = vmatprep.subr.mxu0 0.0
    %198 = vmatpush1.msra.mxu0 %v88
    %199 = vmatprep.subr.mxu0 0.0
    %200 = vmatpush1.msra.mxu0 %v89
    %201 = vmatprep.subr.mxu0 0.0
    %202 = vmatpush1.msra.mxu0 %v90
    %203 = vmatprep.subr.mxu0 0.0
    %204 = vmatpush1.msra.mxu0 %v91
    %205 = vmatprep.subr.mxu0 0.0
    %206 = vmatpush1.msra.mxu0 %v92
    %207 = vmatprep.subr.mxu0 0.0
    %208 = vmatpush1.msra.mxu0 %v93
    %209 = vmatprep.subr.mxu0 0.0
    %210 = vmatpush1.msra.mxu0 %v94
    %211 = vmatprep.subr.mxu0 0.0
    %212 = vmatpush1.msra.mxu0 %v95
    %213 = vmatprep.subr.mxu0 0.0
    %214 = vmatpush1.msra.mxu0 %v96
    %215 = vmatprep.subr.mxu0 0.0
    %216 = vmatpush1.msra.mxu0 %v97
    %217 = vmatprep.subr.mxu0 0.0
    %218 = vmatpush1.msra.mxu0 %v98
    %219 = vmatprep.subr.mxu0 0.0
    %220 = vmatpush1.msra.mxu0 %v99
    %221 = vmatprep.subr.mxu0 0.0
    %222 = vmatpush1.msra.mxu0 %v100
    %223 = vmatprep.subr.mxu0 0.0
    %224 = vmatpush1.msra.mxu0 %v101
    %225 = vmatprep.subr.mxu0 0.0
    %226 = vmatpush1.msra.mxu0 %v102
    %227 = vmatprep.subr.mxu0 0.0
    %228 = vmatpush1.msra.mxu0 %v103
    %229 = vmatprep.subr.mxu0 0.0
    %230 = vmatpush1.msra.mxu0 %v104
    %231 = vmatprep.subr.mxu0 0.0
    %232 = vmatpush1.msra.mxu0 %v105
    %233 = vmatprep.subr.mxu0 0.0
    %234 = vmatpush1.msra.mxu0 %v106
    %235 = vmatprep.subr.mxu0 0.0
    %236 = vmatpush1.msra.mxu0 %v107
    %237 = vmatprep.subr.mxu0 0.0
    %238 = vmatpush1.msra.mxu0 %v108
    %239 = vmatprep.subr.mxu0 0.0
    %240 = vmatpush1.msra.mxu0 %v109
    %241 = vmatprep.subr.mxu0 0.0
    %242 = vmatpush1.msra.mxu0 %v110
    %243 = vmatprep.subr.mxu0 0.0
    %244 = vmatpush1.msra.mxu0 %v111
    %245 = vmatprep.mubr.f32.mxu0 %v75
    %246 = vmatmul.mubr.f32.gmra.mrb[0].mxu0 %v74
    %v247 = vpop.f32.mrb[0].mxu0
    %v248 = vadd.f32 %v180, %v247
    %v249 = vpop.f32.mrb[0].mxu0
    %250 = vdwg.mxu0
    %251 = vmatprep.subr.mxu0 0.0
    %252 = vmatpush1.msra.mxu0 %v112
    %253 = vmatprep.subr.mxu0 0.0
    %254 = vmatpush1.msra.mxu0 %v113
    %255 = vmatprep.subr.mxu0 0.0
    %256 = vmatpush1.msra.mxu0 %v114
    %257 = vmatprep.subr.mxu0 0.0
    %258 = vmatpush1.msra.mxu0 %v115
    %259 = vmatprep.subr.mxu0 0.0
    %260 = vmatpush1.msra.mxu0 %v116
    %261 = vmatprep.subr.mxu0 0.0
    %262 = vmatpush1.msra.mxu0 %v117
    %263 = vmatprep.subr.mxu0 0.0
    %264 = vmatpush1.msra.mxu0 %v118
    %265 = vmatprep.subr.mxu0 0.0
    %266 = vmatpush1.msra.mxu0 %v119
    %267 = vmatprep.subr.mxu0 0.0
    %268 = vmatpush1.msra.mxu0 %v120
    %269 = vmatprep.subr.mxu0 0.0
    %270 = vmatpush1.msra.mxu0 %v121
    %271 = vmatprep.subr.mxu0 0.0
    %272 = vmatpush1.msra.mxu0 %v122
    %273 = vmatprep.subr.mxu0 0.0
    %274 = vmatpush1.msra.mxu0 %v123
    %275 = vmatprep.subr.mxu0 0.0
    %276 = vmatpush1.msra.mxu0 %v124
    %277 = vmatprep.subr.mxu0 0.0
    %278 = vmatpush1.msra.mxu0 %v125
    %279 = vmatprep.subr.mxu0 0.0
    %280 = vmatpush1.msra.mxu0 %v126
    %281 = vmatprep.subr.mxu0 0.0
    %282 = vmatpush1.msra.mxu0 %v127
    %283 = vmatprep.subr.mxu0 0.0
    %284 = vmatpush1.msra.mxu0 %v128
    %285 = vmatprep.subr.mxu0 0.0
    %286 = vmatpush1.msra.mxu0 %v129
    %287 = vmatprep.subr.mxu0 0.0
    %288 = vmatpush1.msra.mxu0 %v130
    %289 = vmatprep.subr.mxu0 0.0
    %290 = vmatpush1.msra.mxu0 %v131
    %291 = vmatprep.subr.mxu0 0.0
    %292 = vmatpush1.msra.mxu0 %v132
    %293 = vmatprep.subr.mxu0 0.0
    %294 = vmatpush1.msra.mxu0 %v133
    %295 = vmatprep.subr.mxu0 0.0
    %296 = vmatpush1.msra.mxu0 %v134
    %297 = vmatprep.subr.mxu0 0.0
    %298 = vmatpush1.msra.mxu0 %v135
    %299 = vmatprep.subr.mxu0 0.0
    %300 = vmatpush1.msra.mxu0 %v136
    %301 = vmatprep.subr.mxu0 0.0
    %302 = vmatpush1.msra.mxu0 %v137
    %303 = vmatprep.subr.mxu0 0.0
    %304 = vmatpush1.msra.mxu0 %v138
    %305 = vmatprep.subr.mxu0 0.0
    %306 = vmatpush1.msra.mxu0 %v139
    %307 = vmatprep.subr.mxu0 0.0
    %308 = vmatpush1.msra.mxu0 %v140
    %309 = vmatprep.subr.mxu0 0.0
    %310 = vmatpush1.msra.mxu0 %v141
    %311 = vmatprep.subr.mxu0 0.0
    %312 = vmatpush1.msra.mxu0 %v142
    %313 = vmatprep.subr.mxu0 0.0
    %314 = vmatpush1.msra.mxu0 %v143
    %315 = vmatprep.mubr.f32.mxu0 %v77
    %316 = vmatmul.mubr.f32.gmra.mrb[0].mxu0 %v76
    %v317 = vpop.f32.mrb[0].mxu0
    %v318 = vadd.f32 %v248, %v317
    %v319 = vpop.f32.mrb[0].mxu0
    %320 = vdwg.mxu0
    %321 = vmatprep.subr.mxu0 0.0
    %322 = vmatpush1.msra.mxu0 %v144
    %323 = vmatprep.subr.mxu0 0.0
    %324 = vmatpush1.msra.mxu0 %v145
    %325 = vmatprep.subr.mxu0 0.0
    %326 = vmatpush1.msra.mxu0 %v146
    %327 = vmatprep.subr.mxu0 0.0
    %328 = vmatpush1.msra.mxu0 %v147
    %329 = vmatprep.subr.mxu0 0.0
    %330 = vmatpush1.msra.mxu0 %v148
    %331 = vmatprep.subr.mxu0 0.0
    %332 = vmatpush1.msra.mxu0 %v149
    %333 = vmatprep.subr.mxu0 0.0
    %334 = vmatpush1.msra.mxu0 %v150
    %335 = vmatprep.subr.mxu0 0.0
    %336 = vmatpush1.msra.mxu0 %v151
    %337 = vmatprep.subr.mxu0 0.0
    %338 = vmatpush1.msra.mxu0 %v152
    %339 = vmatprep.subr.mxu0 0.0
    %340 = vmatpush1.msra.mxu0 %v153
    %341 = vmatprep.subr.mxu0 0.0
    %342 = vmatpush1.msra.mxu0 %v154
    %343 = vmatprep.subr.mxu0 0.0
    %344 = vmatpush1.msra.mxu0 %v155
    %345 = vmatprep.subr.mxu0 0.0
    %346 = vmatpush1.msra.mxu0 %v156
    %347 = vmatprep.subr.mxu0 0.0
    %348 = vmatpush1.msra.mxu0 %v157
    %349 = vmatprep.subr.mxu0 0.0
    %350 = vmatpush1.msra.mxu0 %v158
    %351 = vmatprep.subr.mxu0 0.0
    %352 = vmatpush1.msra.mxu0 %v159
    %353 = vmatprep.subr.mxu0 0.0
    %354 = vmatpush1.msra.mxu0 %v160
    %355 = vmatprep.subr.mxu0 0.0
    %356 = vmatpush1.msra.mxu0 %v161
    %357 = vmatprep.subr.mxu0 0.0
    %358 = vmatpush1.msra.mxu0 %v162
    %359 = vmatprep.subr.mxu0 0.0
    %360 = vmatpush1.msra.mxu0 %v163
    %361 = vmatprep.subr.mxu0 0.0
    %362 = vmatpush1.msra.mxu0 %v164
    %363 = vmatprep.subr.mxu0 0.0
    %364 = vmatpush1.msra.mxu0 %v165
    %365 = vmatprep.subr.mxu0 0.0
    %366 = vmatpush1.msra.mxu0 %v166
    %367 = vmatprep.subr.mxu0 0.0
    %368 = vmatpush1.msra.mxu0 %v167
    %369 = vmatprep.subr.mxu0 0.0
    %370 = vmatpush1.msra.mxu0 %v168
    %371 = vmatprep.subr.mxu0 0.0
    %372 = vmatpush1.msra.mxu0 %v169
    %373 = vmatprep.subr.mxu0 0.0
    %374 = vmatpush1.msra.mxu0 %v170
    %375 = vmatprep.subr.mxu0 0.0
    %376 = vmatpush1.msra.mxu0 %v171
    %377 = vmatprep.subr.mxu0 0.0
    %378 = vmatpush1.msra.mxu0 %v172
    %379 = vmatprep.subr.mxu0 0.0
    %380 = vmatpush1.msra.mxu0 %v173
    %381 = vmatprep.subr.mxu0 0.0
    %382 = vmatpush1.msra.mxu0 %v174
    %383 = vmatprep.subr.mxu0 0.0
    %384 = vmatpush1.msra.mxu0 %v175
    %385 = vmatprep.mubr.f32.mxu0 %v79
    %386 = vmatmul.mubr.f32.gmra.mrb[0].mxu0 %v78
    %v387 = vpop.f32.mrb[0].mxu0
    %v388 = vadd.f32 %v318, %v387
    %v389 = vpop.f32.mrb[0].mxu0
    %390 = vdwg.mxu0
    %v391 = vmax.f32 %v388, 0.0
    %v392 = vld [vmem:[#allocation7] sm:$0xff]
    %v393 = vld [vmem:[#allocation7 + $0x8] sm:$0xff]
    %v394 = vld [vmem:[#allocation7 + $0x10] sm:$0xff]
    %v395 = vld [vmem:[#allocation7 + $0x18] sm:$0xff]
    %v396 = vld [vmem:[#allocation7 + $0x20] sm:$0xff]
    %v397 = vld [vmem:[#allocation7 + $0x28] sm:$0xff]
    %v398 = vld [vmem:[#allocation7 + $0x30] sm:$0xff]
    %v399 = vld [vmem:[#allocation7 + $0x38] sm:$0xff]
    %v400 = vld [vmem:[#allocation7 + $0x40] sm:$0xff]
    %v401 = vld [vmem:[#allocation7 + $0x48] sm:$0xff]
    %v402 = vld [vmem:[#allocation7 + $0x50] sm:$0xff]
    %v403 = vld [vmem:[#allocation7 + $0x58] sm:$0xff]
    %v404 = vld [vmem:[#allocation7 + $0x60] sm:$0xff]
    %v405 = vld [vmem:[#allocation7 + $0x68] sm:$0xff]
    %v406 = vld [vmem:[#allocation7 + $0x70] sm:$0xff]
    %v407 = vld [vmem:[#allocation7 + $0x78] sm:$0xff]
    %v408 = vld [vmem:[%s4 + $0x1] sm:$0x1]
    %v409 = vlaneseq
    %v410 = vshrl.u32 %v409, 7
    %v411 = vsub.s32 0, %v410
    %v412 = vrot.slane %v408, %v411
    %413 = vmatprep.subr.mxu0 0.0
    %414 = vmatpush1.msra.mxu0 %v392
    %415 = vmatprep.subr.mxu0 0.0
    %416 = vmatpush1.msra.mxu0 %v393
    %417 = vmatprep.subr.mxu0 0.0
    %418 = vmatpush1.msra.mxu0 %v394
    %419 = vmatprep.subr.mxu0 0.0
    %420 = vmatpush1.msra.mxu0 %v395
    %421 = vmatprep.subr.mxu0 0.0
    %422 = vmatpush1.msra.mxu0 %v396
    %423 = vmatprep.subr.mxu0 0.0
    %424 = vmatpush1.msra.mxu0 %v397
    %425 = vmatprep.subr.mxu0 0.0
    %426 = vmatpush1.msra.mxu0 %v398
    %427 = vmatprep.subr.mxu0 0.0
    %428 = vmatpush1.msra.mxu0 %v399
    %429 = vmatprep.subr.mxu0 0.0
    %430 = vmatpush1.msra.mxu0 %v400
    %431 = vmatprep.subr.mxu0 0.0
    %432 = vmatpush1.msra.mxu0 %v401
    %433 = vmatprep.subr.mxu0 0.0
    %434 = vmatpush1.msra.mxu0 %v402
    %435 = vmatprep.subr.mxu0 0.0
    %436 = vmatpush1.msra.mxu0 %v403
    %437 = vmatprep.subr.mxu0 0.0
    %438 = vmatpush1.msra.mxu0 %v404
    %439 = vmatprep.subr.mxu0 0.0
    %440 = vmatpush1.msra.mxu0 %v405
    %441 = vmatprep.subr.mxu0 0.0
    %442 = vmatpush1.msra.mxu0 %v406
    %443 = vmatprep.subr.mxu0 0.0
    %444 = vmatpush1.msra.mxu0 %v407
    %445 = vmatprep.subr.mxu0 0.0
    %446 = vmatpush1.msra.mxu0 0.0
    %447 = vmatprep.subr.mxu0 0.0
    %448 = vmatpush1.msra.mxu0 0.0
    %449 = vmatprep.subr.mxu0 0.0
    %450 = vmatpush1.msra.mxu0 0.0
    %451 = vmatprep.subr.mxu0 0.0
    %452 = vmatpush1.msra.mxu0 0.0
    %453 = vmatprep.subr.mxu0 0.0
    %454 = vmatpush1.msra.mxu0 0.0
    %455 = vmatprep.subr.mxu0 0.0
    %456 = vmatpush1.msra.mxu0 0.0
    %457 = vmatprep.subr.mxu0 0.0
    %458 = vmatpush1.msra.mxu0 0.0
    %459 = vmatprep.subr.mxu0 0.0
    %460 = vmatpush1.msra.mxu0 0.0
    %461 = vmatprep.subr.mxu0 0.0
    %462 = vmatpush1.msra.mxu0 0.0
    %463 = vmatprep.subr.mxu0 0.0
    %464 = vmatpush1.msra.mxu0 0.0
    %465 = vmatprep.subr.mxu0 0.0
    %466 = vmatpush1.msra.mxu0 0.0
    %467 = vmatprep.subr.mxu0 0.0
    %468 = vmatpush1.msra.mxu0 0.0
    %469 = vmatprep.subr.mxu0 0.0
    %470 = vmatpush1.msra.mxu0 0.0
    %471 = vmatprep.subr.mxu0 0.0
    %472 = vmatpush1.msra.mxu0 0.0
    %473 = vmatprep.subr.mxu0 0.0
    %474 = vmatpush1.msra.mxu0 0.0
    %475 = vmatprep.subr.mxu0 0.0
    %476 = vmatpush1.msra.mxu0 0.0
    %477 = vmatprep.mubr.f32.mxu0 0.0
    %478 = vmatmul.mubr.f32.gmra.mrb[0].mxu0 %v391
    %v479 = vpop.f32.mrb[0].mxu0
    %v480 = vadd.f32 %v412, %v479
    %v481 = vpop.f32.mrb[0].mxu0
    %482 = vdwg.mxu0
    %v483 = vmax.f32 %v480, 0.0
    %v484 = vld [vmem:[#allocation8] sm:$0xff]
    %v485 = vld [vmem:[#allocation8 + $0x8] sm:$0xff]
    %v486 = vld [vmem:[#allocation8 + $0x10] sm:$0xff]
    %v487 = vld [vmem:[#allocation8 + $0x18] sm:$0xff]
    %v488 = vld [vmem:[#allocation8 + $0x20] sm:$0xff]
    %v489 = vld [vmem:[#allocation8 + $0x28] sm:$0xff]
    %v490 = vld [vmem:[#allocation8 + $0x30] sm:$0xff]
    %v491 = vld [vmem:[#allocation8 + $0x38] sm:$0xff]
    %v492 = vld [vmem:[#allocation8 + $0x40] sm:$0xff]
    %v493 = vld [vmem:[#allocation8 + $0x48] sm:$0xff]
    %v494 = vld [vmem:[#allocation8 + $0x50] sm:$0xff]
    %v495 = vld [vmem:[#allocation8 + $0x58] sm:$0xff]
    %v496 = vld [vmem:[#allocation8 + $0x60] sm:$0xff]
    %v497 = vld [vmem:[#allocation8 + $0x68] sm:$0xff]
    %v498 = vld [vmem:[#allocation8 + $0x70] sm:$0xff]
    %v499 = vld [vmem:[#allocation8 + $0x78] sm:$0xff]
    %v500 = vld [vmem:[%s4 + $0x2] sm:$0x1]
    %v501 = vlaneseq
    %v502 = vshrl.u32 %v501, 7
    %v503 = vsub.s32 0, %v502
    %v504 = vrot.slane %v500, %v503
    %505 = vmatprep.subr.mxu0 0.0
    %506 = vmatpush1.msra.mxu0 %v484
    %507 = vmatprep.subr.mxu0 0.0
    %508 = vmatpush1.msra.mxu0 %v485
    %509 = vmatprep.subr.mxu0 0.0
    %510 = vmatpush1.msra.mxu0 %v486
    %511 = vmatprep.subr.mxu0 0.0
    %512 = vmatpush1.msra.mxu0 %v487
    %513 = vmatprep.subr.mxu0 0.0
    %514 = vmatpush1.msra.mxu0 %v488
    %515 = vmatprep.subr.mxu0 0.0
    %516 = vmatpush1.msra.mxu0 %v489
    %517 = vmatprep.subr.mxu0 0.0
    %518 = vmatpush1.msra.mxu0 %v490
    %519 = vmatprep.subr.mxu0 0.0
    %520 = vmatpush1.msra.mxu0 %v491
    %521 = vmatprep.subr.mxu0 0.0
    %522 = vmatpush1.msra.mxu0 %v492
    %523 = vmatprep.subr.mxu0 0.0
    %524 = vmatpush1.msra.mxu0 %v493
    %525 = vmatprep.subr.mxu0 0.0
    %526 = vmatpush1.msra.mxu0 %v494
    %527 = vmatprep.subr.mxu0 0.0
    %528 = vmatpush1.msra.mxu0 %v495
    %529 = vmatprep.subr.mxu0 0.0
    %530 = vmatpush1.msra.mxu0 %v496
    %531 = vmatprep.subr.mxu0 0.0
    %532 = vmatpush1.msra.mxu0 %v497
    %533 = vmatprep.subr.mxu0 0.0
    %534 = vmatpush1.msra.mxu0 %v498
    %535 = vmatprep.subr.mxu0 0.0
    %536 = vmatpush1.msra.mxu0 %v499
    %537 = vmatprep.subr.mxu0 0.0
    %538 = vmatpush1.msra.mxu0 0.0
    %539 = vmatprep.subr.mxu0 0.0
    %540 = vmatpush1.msra.mxu0 0.0
    %541 = vmatprep.subr.mxu0 0.0
    %542 = vmatpush1.msra.mxu0 0.0
    %543 = vmatprep.subr.mxu0 0.0
    %544 = vmatpush1.msra.mxu0 0.0
    %545 = vmatprep.subr.mxu0 0.0
    %546 = vmatpush1.msra.mxu0 0.0
    %547 = vmatprep.subr.mxu0 0.0
    %548 = vmatpush1.msra.mxu0 0.0
    %549 = vmatprep.subr.mxu0 0.0
    %550 = vmatpush1.msra.mxu0 0.0
    %551 = vmatprep.subr.mxu0 0.0
    %552 = vmatpush1.msra.mxu0 0.0
    %553 = vmatprep.subr.mxu0 0.0
    %554 = vmatpush1.msra.mxu0 0.0
    %555 = vmatprep.subr.mxu0 0.0
    %556 = vmatpush1.msra.mxu0 0.0
    %557 = vmatprep.subr.mxu0 0.0
    %558 = vmatpush1.msra.mxu0 0.0
    %559 = vmatprep.subr.mxu0 0.0
    %560 = vmatpush1.msra.mxu0 0.0
    %561 = vmatprep.subr.mxu0 0.0
    %562 = vmatpush1.msra.mxu0 0.0
    %563 = vmatprep.subr.mxu0 0.0
    %564 = vmatpush1.msra.mxu0 0.0
    %565 = vmatprep.subr.mxu0 0.0
    %566 = vmatpush1.msra.mxu0 0.0
    %567 = vmatprep.subr.mxu0 0.0
    %568 = vmatpush1.msra.mxu0 0.0
    %569 = vmatprep.mubr.f32.mxu0 0.0
    %570 = vmatmul.mubr.f32.gmra.mrb[0].mxu0 %v483
    %v571 = vpop.f32.mrb[0].mxu0
    %v572 = vadd.f32 %v504, %v571
    %v573 = vpop.f32.mrb[0].mxu0
    %574 = vdwg.mxu0
    %575 = vmax.xlane.f32.xlu0 %v572
    %v576 = vpop.xlane.xlu0 %575
    %v577 = vsub.f32 %v572, %v576
    %v578 = vmul.f32 %v577, 1.442695
    %v579 = vpow.pop %v578
    %580 = vadd.xlane.f32.xlu0 %v579
    %v581 = vpop.xlane.xlu0 %580
    %v582 = vlog2.pop %v581
    %v583 = vmul.f32 %v582, 0.6931472
    %v584 = vsub.f32 %v577, %v583
    %585 = vst [vmem:[#allocation10] sm:$0xff] %v584
    // Predicated region
    $region38: #{tpu_custom_call.1} parent=1 // pred_check
      _
    $region39: #{tpu_custom_call.1} parent=1 // pred_check_branch
      %587 = sbr.rel (0) target = $region41
    $region40: #{tpu_custom_call.1} parent=1 // pred_region
      %s589 = ssub.s32 128, 128
      %590 = vsyncadd [#allocation4], %s589
      %s592 = sshll.u32 [#allocation10], 4
      %s593 = int_to_ptr.vmem [resolvable:$true] %s592
      %595 = dma.vmem_to_hbm [thread:$0]  %s593, 128, %s5, [#allocation4]
    $region41: #{tpu_custom_call.1} parent=1 // pred_fallthru
      _
    // Predicated region
    $region42: #{tpu_custom_call.1} parent=1 // pred_check
      _
    $region43: #{tpu_custom_call.1} parent=1 // pred_check_branch
      %597 = sbr.rel (0) target = $region45
    $region44: #{tpu_custom_call.1} parent=1 // pred_region
      %598 = dma.done [#allocation4], 128
    $region45: #{tpu_custom_call.1} parent=1 // pred_fallthru
      _
    %599 = vsyncpa [#allocation3], 1
    %600 = vsyncpa [#allocation6], 1
    %601 = vsyncpa [#allocation9], 1
    %602 = vsyncpa [#allocation4], 1

</llo_original>
